<compile_context>
chip_gen: v5e
topology: v5e:2x2
jax: 0.10.0
libtpu: 0.0.40
codegen_flags: <defaults>
</compile_context>

<pallas_src>
import functools

import jax
import jax.numpy as jnp
from jax.experimental import pallas as pl
from jax.experimental.pallas import tpu as pltpu


# --------------------------------------------------------------------------- #
# Kernels
# --------------------------------------------------------------------------- #
def _vlv_std_prior_kernel(params_ref, eps_ref, sample_ref, kl_ref, *, inv_batch_size):
    """Specialized path: prior == Normal(0, 1) -> prior tensors not needed.

    params_ref : (2, rows, cols)  [0]=q_mu, [1]=q_log_sigma
    eps_ref    : (rows, cols)
    sample_ref : (rows, cols)            (VMEM, lane-dense)
    kl_ref     : (1, 1)                  (SMEM scalar)
    """
    q_mu = params_ref[0].astype(jnp.float32)
    q_log_sigma = params_ref[1].astype(jnp.float32)
    q_sigma = jnp.exp(q_log_sigma)

    # --- reparameterized sample: q_x.rsample() ---
    eps = eps_ref[...].astype(jnp.float32)
    sample_ref[...] = (q_mu + q_sigma * eps).astype(sample_ref.dtype)

    # --- KL(N(q_mu, q_sigma) || N(0, 1)), using log(exp(x)) == x ---
    kl = -q_log_sigma + 0.5 * (q_sigma * q_sigma + q_mu * q_mu) - 0.5
    kl_ref[0, 0] = jnp.sum(kl) * jnp.float32(inv_batch_size)


def _vlv_general_prior_kernel(params_ref, eps_ref, sample_ref, kl_ref, *,
                              inv_batch_size):
    """General prior path.

    params_ref : (4, rows, cols)  [0]=q_mu, [1]=q_log_sigma, [2]=p_mu, [3]=p_var
    (the prior *variance* is used as the Normal scale, matching the torch code)
    """
    q_mu = params_ref[0].astype(jnp.float32)
    q_log_sigma = params_ref[1].astype(jnp.float32)
    p_mu = params_ref[2].astype(jnp.float32)
    p_sigma = params_ref[3].astype(jnp.float32)  # variance-as-scale (torch bug kept)
    q_sigma = jnp.exp(q_log_sigma)

    eps = eps_ref[...].astype(jnp.float32)
    sample_ref[...] = (q_mu + q_sigma * eps).astype(sample_ref.dtype)

    # KL(N(q_mu, q_sigma) || N(p_mu, p_sigma)):
    #   log(p_sigma) - q_log_sigma + (q_sigma^2 + (q_mu - p_mu)^2) / (2 p_sigma^2) - 0.5
    log_ratio = jnp.log(p_sigma) - q_log_sigma
    inv_two_var = pl.reciprocal(2.0 * p_sigma * p_sigma, approx=True)
    diff = q_mu - p_mu
    kl = log_ratio + (q_sigma * q_sigma + diff * diff) * inv_two_var - 0.5
    kl_ref[0, 0] = jnp.sum(kl) * jnp.float32(inv_batch_size)


# --------------------------------------------------------------------------- #
# Wrapper
# --------------------------------------------------------------------------- #
def variational_latent_variable_forward(q_mu, q_log_sigma, batch_idx, eps,
                                        prior_loc=None, prior_var=None):
    """Forward pass.  Returns (sample (Q, B, D), latents_kl scalar).

    If prior_loc/prior_var are None the prior is the standard Normal(0, 1) and the
    specialized (prior-free) kernel is used.
    """
    standard_prior = prior_loc is None and prior_var is None

    # ---- single fused gather over all parameter tensors ----
    if standard_prior:
        params = jnp.stack([q_mu, q_log_sigma], axis=0)                   # (2,Q,N,D)
    else:
        params = jnp.stack(
            [q_mu, q_log_sigma,
             jnp.broadcast_to(prior_loc, q_mu.shape),
             jnp.broadcast_to(prior_var, q_mu.shape)], axis=0)            # (4,Q,N,D)
    params_b = params[:, :, batch_idx, :]                                 # (P,Q,B,D)

    P, Q, B, D = params_b.shape
    total = Q * B * D
    # Lane-dense slab: 128-wide lanes if the element count allows, else (Q*B, D).
    if total % 128 == 0:
        rows, cols = total // 128, 128
    else:
        rows, cols = Q * B, D
    params_2d = params_b.reshape(P, rows, cols)
    eps_2d = eps.reshape(rows, cols)

    sample_dtype = jnp.result_type(q_mu.dtype, eps.dtype)
    kernel_fn = _vlv_std_prior_kernel if standard_prior else _vlv_general_prior_kernel
    kernel = functools.partial(kernel_fn, inv_batch_size=1.0 / float(B))

    sample_2d, kl = pl.pallas_call(
        kernel,
        out_shape=(
            jax.ShapeDtypeStruct((rows, cols), sample_dtype),
            jax.ShapeDtypeStruct((1, 1), jnp.float32),
        ),
        in_specs=[
            pl.BlockSpec(memory_space=pltpu.MemorySpace.VMEM),   # stacked params
            pl.BlockSpec(memory_space=pltpu.MemorySpace.VMEM),   # eps
        ],
        out_specs=(
            pl.BlockSpec(memory_space=pltpu.MemorySpace.VMEM),   # sample (lane-dense)
            pl.BlockSpec(memory_space=pltpu.MemorySpace.SMEM),   # KL scalar
        ),
    )(params_2d, eps_2d)

    return sample_2d.reshape(Q, B, D), kl[0, 0]


# --------------------------------------------------------------------------- #
# Pure-JAX reference (mirrors the torch math, incl. variance-as-scale)
# --------------------------------------------------------------------------- #
def _reference(q_mu, q_log_sigma, prior_loc, prior_var, batch_idx, eps):
    q_mu_b = q_mu[:, batch_idx, :]
    q_sigma_b = jnp.exp(q_log_sigma[:, batch_idx, :])
    p_mu_b = prior_loc[:, batch_idx, :]
    p_scale_b = prior_var[:, batch_idx, :]
    sample = q_mu_b + q_sigma_b * eps
    kl = (jnp.log(p_scale_b) - jnp.log(q_sigma_b)
          + (q_sigma_b ** 2 + (q_mu_b - p_mu_b) ** 2) / (2.0 * p_scale_b ** 2)
          - 0.5)
    return sample, kl.sum(axis=-1).sum() / batch_idx.shape[0]


if __name__ == "__main__":
    # Module hyperparameters (small, consistent with the module's shapes).
    Q = 4            # latent variables per output
    n_outputs = 16   # number of outputs
    latent_dim = 32  # latent dimensionality

    key = jax.random.PRNGKey(0)
    k_mu, k_ls, k_eps, k_pl, k_pv = jax.random.split(key, 5)

    q_mu = jax.random.normal(k_mu, (Q, n_outputs, latent_dim), dtype=jnp.float32)
    q_log_sigma = jax.random.normal(k_ls, (Q, n_outputs, latent_dim), dtype=jnp.float32)

    # Default batch_idx = arange(n_outputs)
    batch_idx = jnp.arange(n_outputs)

    # rsample noise (generated outside the kernel for determinism).
    eps = jax.random.normal(k_eps, (Q, n_outputs, latent_dim), dtype=jnp.float32)

    # ---------------- standard-Normal prior (specialized kernel) ----------------
    sample, latents_kl = variational_latent_variable_forward(
        q_mu, q_log_sigma, batch_idx, eps)
    sample = jax.block_until_ready(sample)
    latents_kl = jax.block_until_ready(latents_kl)

    ref_sample, ref_kl = _reference(
        q_mu, q_log_sigma, jnp.zeros_like(q_mu), jnp.ones_like(q_mu), batch_idx, eps)
    assert sample.shape == (Q, n_outputs, latent_dim)
    assert jnp.allclose(sample, ref_sample, atol=1e-5, rtol=1e-5)
    assert jnp.allclose(latents_kl, ref_kl, atol=1e-4, rtol=1e-4)

    # ---------------- general prior path (approx-reciprocal KL) -----------------
    prior_loc = 0.1 * jax.random.normal(k_pl, (Q, n_outputs, latent_dim), jnp.float32)
    prior_var = 0.5 + jax.random.uniform(k_pv, (Q, n_outputs, latent_dim), jnp.float32)
    sample_g, kl_g = variational_latent_variable_forward(
        q_mu, q_log_sigma, batch_idx, eps, prior_loc=prior_loc, prior_var=prior_var)
    sample_g = jax.block_until_ready(sample_g)
    kl_g = jax.block_until_ready(kl_g)

    ref_sample_g, ref_kl_g = _reference(
        q_mu, q_log_sigma, prior_loc, prior_var, batch_idx, eps)
    assert jnp.allclose(sample_g, ref_sample_g, atol=1e-5, rtol=1e-5)
    # KL uses an approximate reciprocal (EUP vrcp) -> looser tolerance.
    assert jnp.allclose(kl_g, ref_kl_g, rtol=1e-2, atol=1e-2)

    print("KERNEL_OK")
</pallas_src>

<mosaic_0001>
module attributes {stable_mosaic.version = 11 : i64} {
  func.func @_vlv_std_prior_kernel(%arg0: memref<2x16x128xf32, #tpu.memory_space<vmem>>, %arg1: memref<16x128xf32, #tpu.memory_space<vmem>>, %arg2: memref<16x128xf32, #tpu.memory_space<vmem>>, %arg3: memref<1x1xf32, #tpu.memory_space<smem>>) attributes {dimension_semantics = [], scalar_prefetch = 0 : i64, scratch_operands = 0 : i64, tpu.core_type = #tpu.core_type<tc>} {
    %c0 = arith.constant 0 : index
    %c0_0 = arith.constant 0 : index
    %c0_1 = arith.constant 0 : index
    %0 = vector.load %arg0[%c0, %c0_0, %c0_1] : memref<2x16x128xf32, #tpu.memory_space<vmem>>, vector<1x16x128xf32>
    %1 = vector.shape_cast %0 : vector<1x16x128xf32> to vector<16x128xf32>
    %c1 = arith.constant 1 : index
    %c0_2 = arith.constant 0 : index
    %c0_3 = arith.constant 0 : index
    %2 = vector.load %arg0[%c1, %c0_2, %c0_3] : memref<2x16x128xf32, #tpu.memory_space<vmem>>, vector<1x16x128xf32>
    %3 = vector.shape_cast %2 : vector<1x16x128xf32> to vector<16x128xf32>
    %4 = math.exp %3 : vector<16x128xf32>
    %c0_4 = arith.constant 0 : index
    %c0_5 = arith.constant 0 : index
    %5 = vector.load %arg1[%c0_4, %c0_5] : memref<16x128xf32, #tpu.memory_space<vmem>>, vector<16x128xf32>
    %6 = arith.mulf %4, %5 : vector<16x128xf32>
    %7 = arith.addf %1, %6 : vector<16x128xf32>
    %c0_6 = arith.constant 0 : index
    %c0_7 = arith.constant 0 : index
    %8 = vector.load %arg2[%c0_6, %c0_7] : memref<16x128xf32, #tpu.memory_space<vmem>>, vector<16x128xf32>
    tpu.vector_store %arg2[%c0_6, %c0_7], %7 {strides = array<i32>} : memref<16x128xf32, #tpu.memory_space<vmem>>, vector<16x128xf32>,
    %cst = arith.constant 0.000000e+00 : f32
    %9 = vector.broadcast %cst : f32 to vector<16x128xf32>
    %10 = arith.subf %9, %3 : vector<16x128xf32>
    %11 = arith.mulf %4, %4 : vector<16x128xf32>
    %12 = arith.mulf %1, %1 : vector<16x128xf32>
    %13 = arith.addf %11, %12 : vector<16x128xf32>
    %cst_8 = arith.constant 5.000000e-01 : f32
    %14 = vector.broadcast %cst_8 : f32 to vector<16x128xf32>
    %15 = arith.mulf %14, %13 : vector<16x128xf32>
    %16 = arith.addf %10, %15 : vector<16x128xf32>
    %cst_9 = arith.constant 5.000000e-01 : f32
    %17 = vector.broadcast %cst_9 : f32 to vector<16x128xf32>
    %18 = arith.subf %16, %17 : vector<16x128xf32>
    %19 = vector.shape_cast %18 : vector<16x128xf32> to vector<1x16x128xf32>
    %cst_10 = arith.constant dense<0.000000e+00> : vector<1xf32>
    %20 = vector.multi_reduction <add>, %19, %cst_10 [1, 2] : vector<1x16x128xf32> to vector<1xf32>
    %21 = vector.shape_cast %20 : vector<1xf32> to vector<1x1x1xf32>
    %22 = vector.extract %21[0, 0, 0] : f32 from vector<1x1x1xf32>
    %cst_11 = arith.constant 6.250000e-02 : f32
    %23 = arith.mulf %22, %cst_11 : f32
    %c0_12 = arith.constant 0 : index
    %c0_13 = arith.constant 0 : index
    %24 = memref.load %arg3[%c0_12, %c0_13] : memref<1x1xf32, #tpu.memory_space<smem>>
    memref.store %23, %arg3[%c0_12, %c0_13] : memref<1x1xf32, #tpu.memory_space<smem>>
    return
  }
}

</mosaic_0001>

<llo_original>
// kernel: tpu_custom_call.1
$region0: #{tpu_custom_call.1}
  #allocation0 [shape = 'u32[]', space=smem, size = 0x4, offset = 0x4, fixed_abs, tag = 'smem constant byte address 0x4 - core index']
  #allocation1 [shape = 'u32[72,128]{1,0:T(1,128)}', space=vmem, size = 0x9000, scoped, tag = 'internal scratch']
  %s0 = inlined_call_operand.hbm [shape: f32[2,16,128], index: 0, kind: input, shape index: {}]
  %s1 = inlined_call_operand.hbm [shape: f32[16,128], index: 1, kind: input, shape index: {}]
  %s2 = inlined_call_operand.hbm [shape: f32[16,128], index: 2, kind: output, shape index: {0}]
  %s3 = inlined_call_operand.hbm [shape: f32[1,1], index: 3, kind: output, shape index: {1}]
  %4 = xla_tuple %s2, %s3
  %s5 = sld [smem:[#allocation0]]
  $region34: #{tpu_custom_call.1} parent=0
    _
  %s7 = ssub.s32 1, %s5
  %s8 = scalar_select 0, %s7, %s5
  $region1: #{tpu_custom_call.1} parent=0
    #allocation2 [shape = 'u8[16384]{0}', space=vmem, size = 0x4000, scoped, tag = 'input window, operand 0, single buffered']
    #allocation3 [shape = 's32[1]{0}', space=sflag, size = 0x4, scoped, tag = 'scoped memory for tpu_custom_call.1']
    #allocation4 [shape = 's32[1]{0}', space=sflag, size = 0x4, scoped, tag = 'scoped memory for tpu_custom_call.1']
    #allocation5 [shape = 's32[1]{0}', space=sflag, size = 0x4, scoped, tag = 'scoped memory for tpu_custom_call.1']
    #allocation6 [shape = 'u8[8192]{0}', space=vmem, size = 0x2000, scoped, tag = 'input window, operand 1, single buffered']
    #allocation7 [shape = 's32[1]{0}', space=sflag, size = 0x4, scoped, tag = 'scoped memory for tpu_custom_call.1']
    #allocation8 [shape = 'u8[8192]{0}', space=vmem, size = 0x2000, scoped, tag = 'output window, operand 0, single buffered']
    #allocation9 [shape = 'u8[512]{0}', space=smem, size = 0x200, scoped, tag = 'output window, operand 1, single buffered']
    %9 = vsyncpa [#allocation3], 0
    %10 = vsyncpa [#allocation7], 0
    %11 = vsyncpa [#allocation4], 0
    %12 = vsyncpa [#allocation5], 0
    // Predicated region
    $region2: #{tpu_custom_call.1} parent=1 // pred_check
      _
    $region3: #{tpu_custom_call.1} parent=1 // pred_check_branch
      %14 = sbr.rel (0) target = $region5
    $region4: #{tpu_custom_call.1} parent=1 // pred_region
      %16 = vsyncadd [#allocation3], 0
      %s17 = sshll.u32 %s0, 4
      %s18 = int_to_ptr.hbm [resolvable:$true] %s17
      %s19 = sshll.u32 [#allocation2], 4
      %s20 = int_to_ptr.vmem [resolvable:$true] %s19
      %25 = dma.hbm_to_vmem [thread:$0]  %s18, 512, %s20, [#allocation3], 128, 128, 8
    $region5: #{tpu_custom_call.1} parent=1 // pred_fallthru
      _
    // Predicated region
    $region6: #{tpu_custom_call.1} parent=1 // pred_check
      _
    $region7: #{tpu_custom_call.1} parent=1 // pred_check_branch
      %27 = sbr.rel (0) target = $region9
    $region8: #{tpu_custom_call.1} parent=1 // pred_region
      %29 = vsyncadd [#allocation7], 0
      %s30 = sshll.u32 %s1, 4
      %s31 = int_to_ptr.hbm [resolvable:$true] %s30
      %s32 = sshll.u32 [#allocation6], 4
      %s33 = int_to_ptr.vmem [resolvable:$true] %s32
      %38 = dma.hbm_to_vmem [thread:$0]  %s31, 256, %s33, [#allocation7], 128, 128, 8
    $region9: #{tpu_custom_call.1} parent=1 // pred_fallthru
      _
    // Predicated region
    $region10: #{tpu_custom_call.1} parent=1 // pred_check
      _
    $region11: #{tpu_custom_call.1} parent=1 // pred_check_branch
      %40 = sbr.rel (0) target = $region13
    $region12: #{tpu_custom_call.1} parent=1 // pred_region
      %42 = dma.done [#allocation3], 512
    $region13: #{tpu_custom_call.1} parent=1 // pred_fallthru
      _
    // Predicated region
    $region14: #{tpu_custom_call.1} parent=1 // pred_check
      _
    $region15: #{tpu_custom_call.1} parent=1 // pred_check_branch
      %44 = sbr.rel (0) target = $region17
    $region16: #{tpu_custom_call.1} parent=1 // pred_region
      %46 = dma.done [#allocation7], 256
    $region17: #{tpu_custom_call.1} parent=1 // pred_fallthru
      _
    %v47 = vld [vmem:[#allocation2] sm:$0xff]
    %v48 = vld [vmem:[#allocation2 + $0x8] sm:$0xff]
    %s49 = scalar_lea.vmem [#allocation2], 16
    %v50 = vld [vmem:[%s49] sm:$0xff]
    %v51 = vld [vmem:[%s49 + $0x8] sm:$0xff]
    %v52 = vmul.f32 %v50, 1.442695
    %v53 = vpow.pop %v52
    %v54 = vmul.f32 %v51, 1.442695
    %v55 = vpow.pop %v54
    %v56 = vld [vmem:[#allocation6] sm:$0xff]
    %v57 = vld [vmem:[#allocation6 + $0x8] sm:$0xff]
    %v58 = vmul.f32 %v53, %v56
    %v59 = vmul.f32 %v55, %v57
    %v60 = vadd.f32 %v47, %v58
    %v61 = vadd.f32 %v48, %v59
    %62 = vst [vmem:[#allocation8] sm:$0xff] %v60
    %63 = vst [vmem:[#allocation8 + $0x8] sm:$0xff] %v61
    %v64 = vsub.f32 0.0, %v50
    %v65 = vsub.f32 0.0, %v51
    %v66 = vmul.f32 %v53, %v53
    %v67 = vmul.f32 %v55, %v55
    %v68 = vmul.f32 %v47, %v47
    %v69 = vmul.f32 %v48, %v48
    %v70 = vadd.f32 %v66, %v68
    %v71 = vadd.f32 %v67, %v69
    %v72 = vmul.f32 %v70, 0.5
    %v73 = vmul.f32 %v71, 0.5
    %v74 = vadd.f32 %v64, %v72
    %v75 = vadd.f32 %v65, %v73
    %v76 = vsub.f32 %v74, 0.5
    %v77 = vsub.f32 %v75, 0.5
    %v78 = vadd.f32 %v76, %v77
    %79 = vadd.xlane.f32.xlu0 %v78
    %v80 = vpop.xlane.xlu0 %79
    %v81 = vrot.slane %v80, 4
    %v82 = vadd.f32 %v80, %v81
    %v83 = vrot.slane %v82, 2
    %v84 = vadd.f32 %v82, %v83
    %v85 = vrot.slane %v84, 1
    %v86 = vadd.f32 %v84, %v85
    %s87 = vtos %v86
    %s88 = smul.f32 %s87, 0.0625
    %s89 = scalar_lea.smem [#allocation9], 0
    %90 = sst [smem:[%s89]] %s88
    // Predicated region
    $region18: #{tpu_custom_call.1} parent=1 // pred_check
      _
    $region19: #{tpu_custom_call.1} parent=1 // pred_check_branch
      %92 = sbr.rel (0) target = $region21
    $region20: #{tpu_custom_call.1} parent=1 // pred_region
      %94 = vsyncadd [#allocation4], 0
      %s95 = sshll.u32 [#allocation8], 4
      %s96 = int_to_ptr.vmem [resolvable:$true] %s95
      %s97 = sshll.u32 %s2, 4
      %s98 = int_to_ptr.hbm [resolvable:$true] %s97
      %103 = dma.vmem_to_hbm [thread:$0]  %s96, 256, %s98, [#allocation4], 128, 128, 8
    $region21: #{tpu_custom_call.1} parent=1 // pred_fallthru
      _
    // Predicated region
    $region22: #{tpu_custom_call.1} parent=1 // pred_check
      _
    $region23: #{tpu_custom_call.1} parent=1 // pred_check_branch
      %105 = sbr.rel (0) target = $region25
    $region24: #{tpu_custom_call.1} parent=1 // pred_region
      %107 = vsyncadd [#allocation5], 0
      %s109 = sshll.u32 %s3, 4
      %s110 = int_to_ptr.hbm [resolvable:$true] %s109
      %112 = dma.smem_to_hbm [#allocation9], 16, %s110, [#allocation5]
    $region25: #{tpu_custom_call.1} parent=1 // pred_fallthru
      _
    // Predicated region
    $region26: #{tpu_custom_call.1} parent=1 // pred_check
      _
    $region27: #{tpu_custom_call.1} parent=1 // pred_check_branch
      %114 = sbr.rel (0) target = $region29
    $region28: #{tpu_custom_call.1} parent=1 // pred_region
      %116 = dma.done [#allocation4], 256
    $region29: #{tpu_custom_call.1} parent=1 // pred_fallthru
      _
    // Predicated region
    $region30: #{tpu_custom_call.1} parent=1 // pred_check
      _
    $region31: #{tpu_custom_call.1} parent=1 // pred_check_branch
      %118 = sbr.rel (0) target = $region33
    $region32: #{tpu_custom_call.1} parent=1 // pred_region
      %120 = dma.done [#allocation5], 16
    $region33: #{tpu_custom_call.1} parent=1 // pred_fallthru
      _
    %121 = sfence
    %122 = vsyncpa [#allocation3], 1
    %123 = vsyncpa [#allocation7], 1
    %124 = vsyncpa [#allocation4], 1
    %125 = vsyncpa [#allocation5], 1

</llo_original>
